<compile_context>
chip_gen: v7x
topology: tpu7x:2x2x1
jax: 0.10.0
libtpu: 0.0.40
codegen_flags: <defaults>
</compile_context>

<pallas_src>
import functools

import jax
import jax.numpy as jnp
from jax.experimental import pallas as pl
from jax.experimental.pallas import tpu as pltpu


def _if_step_kernel(scalars_ref, x_ref, v_ref, out_ref, v_out_ref):
    """One IF-neuron step (charge -> fire -> soft reset), elementwise on a row tile.

    scalars_ref (SMEM, f32[3]): [inv_scale, scale, bias]
      bias is 0.5 on the very first timestep (fused pre-charge), 0.0 otherwise.
    """
    inv_scale = scalars_ref[0]
    scale = scalars_ref[1]
    bias = scalars_ref[2]

    v = v_ref[...] + bias + x_ref[...] * inv_scale          # neuronal_charge (+ fused init)
    spike = (v >= jnp.float32(1.0)).astype(jnp.float32)     # neuronal_fire (threshold 1.0)
    v_out_ref[...] = v - spike                               # soft reset: v -= spike * 1.0
    out_ref[...] = spike * scale                             # rescale output by v_threshold


def _pick_tile_rows(rows, cols, budget_bytes=1 << 20):
    """Largest row-tile (multiple of 8) whose f32 tile stays under ~1 MiB."""
    if rows <= 8:
        return rows
    max_rows = max(8, (budget_bytes // 4) // max(cols, 1))
    tile_r = min(rows, max_rows)
    tile_r = max(8, (tile_r // 8) * 8)
    return rows if tile_r >= rows else tile_r


@functools.partial(jax.jit, donate_argnums=(1,))
def if_step(x2d, v2d, scalars):
    """One IF step on a (rows, cols) f32 slab. Returns (output, new_v). Donates v2d."""
    rows, cols = x2d.shape
    tile_r = _pick_tile_rows(rows, cols)
    grid = (pl.cdiv(rows, tile_r),)
    n = rows * cols

    block = pl.BlockSpec((tile_r, cols), lambda i: (i, 0))  # lane-dense, VMEM (default)

    out, v_out = pl.pallas_call(
        _if_step_kernel,
        out_shape=(
            jax.ShapeDtypeStruct((rows, cols), jnp.float32),
            jax.ShapeDtypeStruct((rows, cols), jnp.float32),
        ),
        grid=grid,
        in_specs=[
            pl.BlockSpec(memory_space=pltpu.MemorySpace.SMEM),  # scalars
            block,                                              # x
            block,                                              # v (membrane state)
        ],
        out_specs=(block, block),                               # spikes*scale, new v
        input_output_aliases={2: 1},                            # v input -> v_out output
        compiler_params=pltpu.CompilerParams(
            dimension_semantics=("parallel",),
        ),
        cost_estimate=pl.CostEstimate(
            flops=6 * n, transcendentals=0, bytes_accessed=4 * n * 4
        ),
    )(scalars, x2d, v2d)
    return out, v_out


class IFNeuron:
    """Stateful JAX/Pallas port of the PyTorch IFNeuron module."""

    def __init__(self, scale=1.0):
        self.v_threshold = float(scale)
        self.t = 0
        self.v = None  # membrane potential, lazily initialized to zeros

    def forward(self, x):
        N, C, H, W = x.shape
        x2d = x.reshape(N * C, H * W).astype(jnp.float32)
        if self.v is None:
            self.v = jnp.zeros_like(x2d)
        # First step: fuse the PyTorch `self.neuron(0.5 * ones)` pre-charge as a bias.
        # (v=0 and 0.5 < threshold 1.0, so the pre-charge never spikes/resets.)
        bias = 0.5 if self.t == 0 else 0.0
        self.t += 1
        scalars = jnp.asarray(
            [1.0 / self.v_threshold, self.v_threshold, bias], dtype=jnp.float32
        )
        out2d, self.v = if_step(x2d, self.v, scalars)
        return out2d.reshape(N, C, H, W)

    def reset(self):
        self.t = 0
        self.v = None


if __name__ == "__main__":
    key = jax.random.PRNGKey(0)
    N, C, H, W = 2, 4, 16, 16
    k1, k2 = jax.random.split(key)
    x1 = jax.random.normal(k1, (N, C, H, W), dtype=jnp.float32)
    x2 = jax.random.normal(k2, (N, C, H, W), dtype=jnp.float32)

    scale = 1.0
    neuron = IFNeuron(scale=scale)

    # ---- step 1 (includes fused 0.5 pre-charge) ----
    out1 = neuron.forward(x1)
    out1 = jax.block_until_ready(out1)

    v_ref = jnp.full_like(x1, 0.5) + x1 / scale
    spike1 = (v_ref >= 1.0).astype(jnp.float32)
    ref1 = spike1 * scale
    v_ref = v_ref - spike1

    assert out1.shape == (N, C, H, W)
    assert jnp.allclose(out1, ref1), "step-1 output mismatch vs reference"
    assert jnp.allclose(neuron.v, v_ref.reshape(N * C, H * W)), "step-1 membrane mismatch"

    # ---- step 2 (normal charge/fire/reset, no pre-charge) ----
    out2 = neuron.forward(x2)
    out2 = jax.block_until_ready(out2)

    v_ref = v_ref + x2 / scale
    spike2 = (v_ref >= 1.0).astype(jnp.float32)
    ref2 = spike2 * scale
    v_ref = v_ref - spike2

    assert jnp.allclose(out2, ref2), "step-2 output mismatch vs reference"
    assert jnp.allclose(neuron.v, v_ref.reshape(N * C, H * W)), "step-2 membrane mismatch"

    print("KERNEL_OK")
</pallas_src>

<mosaic_0001>
module attributes {stable_mosaic.version = 11 : i64} {
  func.func @_if_step_kernel(%arg0: i32, %arg1: memref<3xf32, #tpu.memory_space<smem>>, %arg2: memref<8x256xf32, #tpu.memory_space<vmem>>, %arg3: memref<8x256xf32, #tpu.memory_space<vmem>>, %arg4: memref<8x256xf32, #tpu.memory_space<vmem>>, %arg5: memref<8x256xf32, #tpu.memory_space<vmem>>) attributes {dimension_semantics = [#tpu.dimension_semantics<parallel>], iteration_bounds = array<i64: 1>, scalar_prefetch = 0 : i64, scratch_operands = 0 : i64, tpu.core_type = #tpu.core_type<tc>, window_params = [{transform_indices = @transform_0, window_bounds = array<i64: 3>}, {transform_indices = @transform_1, window_bounds = array<i64: 8, 256>}, {transform_indices = @transform_2, window_bounds = array<i64: 8, 256>}, {transform_indices = @transform_3, window_bounds = array<i64: 8, 256>}, {transform_indices = @transform_4, window_bounds = array<i64: 8, 256>}]} {
    %c0 = arith.constant 0 : index
    %0 = memref.load %arg1[%c0] : memref<3xf32, #tpu.memory_space<smem>>
    %c1 = arith.constant 1 : index
    %1 = memref.load %arg1[%c1] : memref<3xf32, #tpu.memory_space<smem>>
    %c2 = arith.constant 2 : index
    %2 = memref.load %arg1[%c2] : memref<3xf32, #tpu.memory_space<smem>>
    %c0_0 = arith.constant 0 : index
    %c0_1 = arith.constant 0 : index
    %3 = vector.load %arg3[%c0_0, %c0_1] : memref<8x256xf32, #tpu.memory_space<vmem>>, vector<8x256xf32>
    %4 = vector.broadcast %2 : f32 to vector<8x256xf32>
    %5 = arith.addf %3, %4 : vector<8x256xf32>
    %c0_2 = arith.constant 0 : index
    %c0_3 = arith.constant 0 : index
    %6 = vector.load %arg2[%c0_2, %c0_3] : memref<8x256xf32, #tpu.memory_space<vmem>>, vector<8x256xf32>
    %7 = vector.broadcast %0 : f32 to vector<8x256xf32>
    %8 = arith.mulf %6, %7 : vector<8x256xf32>
    %9 = arith.addf %5, %8 : vector<8x256xf32>
    %cst = arith.constant 1.000000e+00 : f32
    %10 = vector.broadcast %cst : f32 to vector<8x256xf32>
    %11 = arith.cmpf oge, %9, %10 : vector<8x256xf32>
    %12 = arith.extui %11 : vector<8x256xi1> to vector<8x256xi32>
    %13 = arith.sitofp %12 : vector<8x256xi32> to vector<8x256xf32>
    %14 = arith.subf %9, %13 : vector<8x256xf32>
    %c0_4 = arith.constant 0 : index
    %c0_5 = arith.constant 0 : index
    %15 = vector.load %arg5[%c0_4, %c0_5] : memref<8x256xf32, #tpu.memory_space<vmem>>, vector<8x256xf32>
    tpu.vector_store %arg5[%c0_4, %c0_5], %14 {strides = array<i32>} : memref<8x256xf32, #tpu.memory_space<vmem>>, vector<8x256xf32>,
    %16 = vector.broadcast %1 : f32 to vector<8x256xf32>
    %17 = arith.mulf %13, %16 : vector<8x256xf32>
    %c0_6 = arith.constant 0 : index
    %c0_7 = arith.constant 0 : index
    %18 = vector.load %arg4[%c0_6, %c0_7] : memref<8x256xf32, #tpu.memory_space<vmem>>, vector<8x256xf32>
    tpu.vector_store %arg4[%c0_6, %c0_7], %17 {strides = array<i32>} : memref<8x256xf32, #tpu.memory_space<vmem>>, vector<8x256xf32>,
    return
  }
  func.func @transform_0(%arg0: i32) -> i32 {
    %c0_i32 = arith.constant 0 : i32
    %c0_i32_0 = arith.constant 0 : i32
    return %c0_i32 : i32
  }
  func.func @transform_1(%arg0: i32) -> (i32, i32) {
    %c0_i32 = arith.constant 0 : i32
    %c0_i32_0 = arith.constant 0 : i32
    return %arg0, %c0_i32 : i32, i32
  }
  func.func @transform_2(%arg0: i32) -> (i32, i32) {
    %c0_i32 = arith.constant 0 : i32
    %c0_i32_0 = arith.constant 0 : i32
    return %arg0, %c0_i32 : i32, i32
  }
  func.func @transform_3(%arg0: i32) -> (i32, i32) {
    %c0_i32 = arith.constant 0 : i32
    %c0_i32_0 = arith.constant 0 : i32
    return %arg0, %c0_i32 : i32, i32
  }
  func.func @transform_4(%arg0: i32) -> (i32, i32) {
    %c0_i32 = arith.constant 0 : i32
    %c0_i32_0 = arith.constant 0 : i32
    return %arg0, %c0_i32 : i32, i32
  }
}

</mosaic_0001>

<llo_original>
// kernel: if_step.1
$region0: #{if_step.1}
  #allocation0 [shape = 'u32[]', space=smem, size = 0x4, offset = 0x4, fixed_abs, tag = 'smem constant byte address 0x4 - core index']
  #allocation1 [shape = 'u32[144,128]{1,0:T(1,128)}', space=vmem, size = 0x12000, scoped, tag = 'internal scratch']
  %s0 = inlined_call_operand.hbm [shape: f32[3], index: 0, kind: input, shape index: {}]
  %s1 = inlined_call_operand.vmem [shape: f32[8,256], index: 1, kind: input, shape index: {}]
  %s2 = inlined_call_operand.vmem [shape: f32[8,256], index: 2, kind: input, shape index: {}, may-alias: {2,4}]
  %s3 = inlined_call_operand.hbm [shape: f32[8,256], index: 3, kind: output, shape index: {0}]
  %s4 = inlined_call_operand.vmem [shape: f32[8,256], index: 4, kind: output, shape index: {1}, may-alias: {2,4}]
  %5 = xla_tuple %s3, %s4
  %s6 = sld [smem:[#allocation0]]
  $region34: #{if_step.1} parent=0
    _
  %s8 = ssub.s32 1, %s6
  %s9 = scalar_select 0, %s8, %s6
  $region1: #{if_step.1} parent=0
    #allocation2 [shape = 'u8[512]{0}', space=smem, size = 0x200, scoped, tag = 'input window, operand 0, single buffered']
    #allocation3 [shape = 's32[1]{0}', space=sflag, size = 0x4, scoped, tag = 'scoped memory for if_step.1']
    #allocation4 [shape = 's32[1]{0}', space=sflag, size = 0x4, scoped, tag = 'scoped memory for if_step.1']
    #allocation5 [shape = 'u8[8192]{0}', space=vmem, size = 0x2000, scoped, tag = 'output window, operand 0, single buffered']
    %10 = vsyncpa [#allocation4], 0
    %11 = vsyncpa [#allocation3], 0
    // Predicated region
    $region2: #{if_step.1} parent=1 // pred_check
      _
    $region3: #{if_step.1} parent=1 // pred_check_branch
      %13 = sbr.rel (0) target = $region5
    $region4: #{if_step.1} parent=1 // pred_region
      %s15 = ssub.s32 16, 16
      %16 = vsyncadd [#allocation4], %s15
      %19 = dma.hbm_to_smem %s0, 16, [#allocation2], [#allocation4]
    $region5: #{if_step.1} parent=1 // pred_fallthru
      _
    // Predicated region
    $region6: #{if_step.1} parent=1 // pred_check
      _
    $region7: #{if_step.1} parent=1 // pred_check_branch
      %21 = sbr.rel (0) target = $region9
    $region8: #{if_step.1} parent=1 // pred_region
      _
    $region9: #{if_step.1} parent=1 // pred_fallthru
      _
    // Predicated region
    $region10: #{if_step.1} parent=1 // pred_check
      _
    $region11: #{if_step.1} parent=1 // pred_check_branch
      %23 = sbr.rel (0) target = $region13
    $region12: #{if_step.1} parent=1 // pred_region
      _
    $region13: #{if_step.1} parent=1 // pred_fallthru
      _
    // Predicated region
    $region14: #{if_step.1} parent=1 // pred_check
      _
    $region15: #{if_step.1} parent=1 // pred_check_branch
      %25 = sbr.rel (0) target = $region17
    $region16: #{if_step.1} parent=1 // pred_region
      %26 = dma.done [#allocation4], 16
    $region17: #{if_step.1} parent=1 // pred_fallthru
      _
    %27 = sfence
    %s28 = sld [smem:[#allocation2]]
    %s29 = sld [smem:[#allocation2 + $0x1]]
    %s30 = sld [smem:[#allocation2 + $0x2]]
    %v31 = vld [vmem:[%s2] sm:$0xff]
    %v32 = vld [vmem:[%s2 + $0x8] sm:$0xff]
    %v33 = vstv %s30
    %v34 = vadd.f32 %v31, %v33
    %v35 = vadd.f32 %v32, %v33
    %v36 = vld [vmem:[%s1] sm:$0xff]
    %v37 = vld [vmem:[%s1 + $0x8] sm:$0xff]
    %v38 = vstv %s28
    %v39 = vmul.f32 %v36, %v38
    %v40 = vmul.f32 %v37, %v38
    %v41 = vadd.f32 %v34, %v39
    %v42 = vadd.f32 %v35, %v40
    %vm43 = vcmp.ge.f32.partialorder %v41, 1.0
    %vm44 = vcmp.ge.f32.partialorder %v42, 1.0
    %v45 = vsel %vm43, 1, 0
    %v46 = vsel %vm44, 1, 0
    %v47 = vcvt.s32.f32 %v45
    %v48 = vcvt.s32.f32 %v46
    %v49 = vsub.f32 %v41, %v47
    %v50 = vsub.f32 %v42, %v48
    %51 = vst [vmem:[%s4] sm:$0xff] %v49
    %52 = vst [vmem:[%s4 + $0x8] sm:$0xff] %v50
    %v53 = vstv %s29
    %v54 = vmul.f32 %v47, %v53
    %v55 = vmul.f32 %v48, %v53
    %56 = vst [vmem:[#allocation5] sm:$0xff] %v54
    %57 = vst [vmem:[#allocation5 + $0x8] sm:$0xff] %v55
    // Predicated region
    $region18: #{if_step.1} parent=1 // pred_check
      _
    $region19: #{if_step.1} parent=1 // pred_check_branch
      %59 = sbr.rel (0) target = $region21
    $region20: #{if_step.1} parent=1 // pred_region
      %s61 = ssub.s32 256, 256
      %62 = vsyncadd [#allocation3], %s61
      %s64 = sshll.u32 [#allocation5], 4
      %s65 = int_to_ptr.vmem [resolvable:$true] %s64
      %67 = dma.vmem_to_hbm [thread:$0]  %s65, 256, %s3, [#allocation3]
    $region21: #{if_step.1} parent=1 // pred_fallthru
      _
    // Predicated region
    $region22: #{if_step.1} parent=1 // pred_check
      _
    $region23: #{if_step.1} parent=1 // pred_check_branch
      %69 = sbr.rel (0) target = $region25
    $region24: #{if_step.1} parent=1 // pred_region
      _
    $region25: #{if_step.1} parent=1 // pred_fallthru
      _
    // Predicated region
    $region26: #{if_step.1} parent=1 // pred_check
      _
    $region27: #{if_step.1} parent=1 // pred_check_branch
      %71 = sbr.rel (0) target = $region29
    $region28: #{if_step.1} parent=1 // pred_region
      %72 = dma.done [#allocation3], 256
    $region29: #{if_step.1} parent=1 // pred_fallthru
      _
    // Predicated region
    $region30: #{if_step.1} parent=1 // pred_check
      _
    $region31: #{if_step.1} parent=1 // pred_check_branch
      %74 = sbr.rel (0) target = $region33
    $region32: #{if_step.1} parent=1 // pred_region
      _
    $region33: #{if_step.1} parent=1 // pred_fallthru
      _
    %75 = vsyncpa [#allocation3], 1
    %76 = vsyncpa [#allocation4], 1

</llo_original>
